<compile_context>
chip_gen: v7x
topology: tpu7x:2x2x1
jax: 0.10.0
libtpu: 0.0.40
codegen_flags: <defaults>
</compile_context>

<pallas_src>
import jax
import jax.numpy as jnp
from jax.experimental import pallas as pl
from jax.experimental.pallas import tpu as pltpu


def dnn_kernel(ids_ref, emb_row_ref, len_ref, w1_ref, b1_ref, w2_ref, b2_ref,
               out_ref, acc_ref):
    """One grid step = one (batch-row r, token s) of the current batch tile i.

    ids_ref:     (B_pad*S,) int32 SMEM  -- scalar-prefetch; consumed by index_maps only
    emb_row_ref: (1, 1, E) f32          -- gathered embedding row for token (r, s)
    len_ref:     (TB, 1)  f32           -- sequence lengths of the tile (VMEM resident)
    w1_ref: (E, HP)  b1_ref: (1, HP)  w2_ref: (HP, CP)  b2_ref: (1, CP)
    out_ref:     (TB, CP) f32           -- revisited across (r, s); flushed once per tile
    acc_ref:     (TB, E)  f32 scratch   -- running sum over the sequence
    """
    del ids_ref  # only used by the embedding-row gather in the index_maps

    r = pl.program_id(1)          # row inside the batch tile
    s = pl.program_id(2)          # token position (reduction axis)

    row = emb_row_ref[0]          # (1, E)

    @pl.when(s == 0)
    def _():
        acc_ref[pl.ds(r, 1), :] = row

    @pl.when(s != 0)
    def _():
        acc_ref[pl.ds(r, 1), :] += row

    # Finalize once per batch tile: pooled mean -> Linear+ReLU -> Linear.
    @pl.when(jnp.logical_and(r == pl.num_programs(1) - 1,
                             s == pl.num_programs(2) - 1))
    def _():
        # representations[i] = sum_s emb[ids[i, s]] / lengths[i]  (matches torch loop)
        inv_len = pl.reciprocal(len_ref[...], approx=False)   # approx=True -> EUP slot
        rep = acc_ref[...] * inv_len                           # (TB, E)
        h = jnp.dot(rep, w1_ref[...], preferred_element_type=jnp.float32) + b1_ref[...]
        h = jnp.maximum(h, 0.0)                                # ReLU
        out_ref[...] = (jnp.dot(h, w2_ref[...],
                                preferred_element_type=jnp.float32) + b2_ref[...])


def baseline_dnn_forward(x_ids, lengths, emb_table, w1, b1, w2, b2, *, batch_tile=8):
    """x_ids: (B, S) int32; lengths: (B,) int; emb_table: (V, E) f32.
    Linear weights stored as (in, out) (transpose of torch's nn.Linear.weight),
    so the kernel computes y = x @ W + b (identical math). Returns (B, C) f32 logits.
    """
    B, S = x_ids.shape
    V, E = emb_table.shape
    H = w1.shape[1]
    C = w2.shape[1]

    TB = batch_tile
    BP = ((B + TB - 1) // TB) * TB            # batch padded to a sublane-aligned tile
    HP = ((H + 127) // 128) * 128             # lane-dense hidden width
    CP = ((C + 127) // 128) * 128             # lane-dense output width (full-width store)

    # --- pad / reshape operands (zero padding; padded batch rows use length 1) ---
    ids_p = jnp.zeros((BP, S), jnp.int32).at[:B, :].set(x_ids.astype(jnp.int32))
    ids_flat = ids_p.reshape(-1)                                        # scalar-prefetch
    len_p = jnp.ones((BP, 1), jnp.float32).at[:B, 0].set(lengths.astype(jnp.float32))
    emb3 = emb_table.astype(jnp.float32).reshape(V, 1, E)               # row-gather layout
    w1_p = jnp.zeros((E, HP), jnp.float32).at[:, :H].set(w1.astype(jnp.float32))
    b1_p = jnp.zeros((1, HP), jnp.float32).at[0, :H].set(b1.astype(jnp.float32))
    w2_p = jnp.zeros((HP, CP), jnp.float32).at[:H, :C].set(w2.astype(jnp.float32))
    b2_p = jnp.zeros((1, CP), jnp.float32).at[0, :C].set(b2.astype(jnp.float32))

    grid = (BP // TB, TB, S)   # (batch tile [parallel], row-in-tile, seq pos [reduction])

    grid_spec = pltpu.PrefetchScalarGridSpec(
        num_scalar_prefetch=1,
        grid=grid,
        in_specs=[
            # Fused embedding gather: one table row per (tile, row, token) step,
            # addressed by the prefetched token ids; the (V, 1, E) table stays in
            # HBM and only the needed rows are DMA'd.
            pl.BlockSpec((1, 1, E),
                         lambda i, r, s, ids: (ids[(i * TB + r) * S + s], 0, 0)),
            pl.BlockSpec((TB, 1), lambda i, r, s, ids: (i, 0)),
            # Weights / biases: constant index maps -> DMA'd once, stay VMEM-resident.
            pl.BlockSpec((E, HP), lambda i, r, s, ids: (0, 0)),
            pl.BlockSpec((1, HP), lambda i, r, s, ids: (0, 0)),
            pl.BlockSpec((HP, CP), lambda i, r, s, ids: (0, 0)),
            pl.BlockSpec((1, CP), lambda i, r, s, ids: (0, 0)),
        ],
        out_specs=pl.BlockSpec((TB, CP), lambda i, r, s, ids: (i, 0)),
        scratch_shapes=[pltpu.VMEM((TB, E), jnp.float32)],
    )

    logits_p = pl.pallas_call(
        dnn_kernel,
        out_shape=jax.ShapeDtypeStruct((BP, CP), jnp.float32),
        grid_spec=grid_spec,
        compiler_params=pltpu.CompilerParams(
            # Batch tiles shard across TensorCores (v7x megacore); (r, s) revisit the
            # same output block so they must be "arbitrary".
            dimension_semantics=("parallel", "arbitrary", "arbitrary"),
            vmem_limit_bytes=32 * 1024 * 1024,   # tiny footprint; fits v7x's 64 MiB VMEM
        ),
    )(ids_flat, emb3, len_p, w1_p, b1_p, w2_p, b2_p)

    return logits_p[:B, :C]


if __name__ == "__main__":
    # Small, deterministic synthetic setup consistent with the module:
    #   vocab=50, embedding_size=32, hidden_size=32 (fixed in __init__), output_size=4
    B, S, V, E, H, C = 2, 8, 50, 32, 32, 4

    key = jax.random.PRNGKey(0)
    k_emb, k_ids, k_w1, k_b1, k_w2, k_b2 = jax.random.split(key, 6)

    emb_table = jax.random.normal(k_emb, (V, E), dtype=jnp.float32)
    x_ids = jax.random.randint(k_ids, (B, S), 0, V, dtype=jnp.int32)
    lengths = jnp.array([S, 5], dtype=jnp.int32)

    # nn.Linear params (stored transposed: (in, out)), deterministic init.
    w1 = 0.1 * jax.random.normal(k_w1, (E, H), dtype=jnp.float32)
    b1 = 0.1 * jax.random.normal(k_b1, (H,), dtype=jnp.float32)
    w2 = 0.1 * jax.random.normal(k_w2, (H, C), dtype=jnp.float32)
    b2 = 0.1 * jax.random.normal(k_b2, (C,), dtype=jnp.float32)

    logits = baseline_dnn_forward(x_ids, lengths, emb_table, w1, b1, w2, b2)
    logits = jax.block_until_ready(logits)

    # Pure-JAX reference of the exact forward semantics (sum over all S positions
    # divided by lengths — matches the torch loop, including padding positions).
    emb_ref = jnp.take(emb_table, x_ids, axis=0)
    rep_ref = jnp.sum(emb_ref, axis=1) / lengths.astype(jnp.float32)[:, None]
    h_ref = jnp.maximum(rep_ref @ w1 + b1, 0.0)
    logits_ref = h_ref @ w2 + b2

    assert logits.shape == (B, C)
    assert jnp.allclose(logits, logits_ref, atol=1e-4, rtol=1e-4), (
        float(jnp.max(jnp.abs(logits - logits_ref))))

    print("KERNEL_OK")
</pallas_src>

<mosaic_0001>
module attributes {stable_mosaic.version = 11 : i64} {
  func.func @dnn_kernel(%arg0: i32, %arg1: i32, %arg2: i32, %arg3: memref<64xi32, #tpu.memory_space<smem>>, %arg4: memref<1x1x32xf32, #tpu.memory_space<vmem>>, %arg5: memref<8x1xf32, #tpu.memory_space<vmem>>, %arg6: memref<32x128xf32, #tpu.memory_space<vmem>>, %arg7: memref<1x128xf32, #tpu.memory_space<vmem>>, %arg8: memref<128x128xf32, #tpu.memory_space<vmem>>, %arg9: memref<1x128xf32, #tpu.memory_space<vmem>>, %arg10: memref<8x128xf32, #tpu.memory_space<vmem>>, %arg11: memref<8x32xf32, #tpu.memory_space<vmem>>) attributes {dimension_semantics = [#tpu.dimension_semantics<parallel>, #tpu.dimension_semantics<arbitrary>, #tpu.dimension_semantics<arbitrary>], iteration_bounds = array<i64: 1, 8, 8>, scalar_prefetch = 1 : i64, scratch_operands = 1 : i64, tpu.core_type = #tpu.core_type<tc>, window_params = [{transform_indices = @transform_0, window_bounds = array<i64: 1, 1, 32>}, {transform_indices = @transform_1, window_bounds = array<i64: 8, 1>}, {pipeline_mode = #tpu.pipeline_mode<synchronous>, transform_indices = @transform_2, window_bounds = array<i64: 32, 128>}, {pipeline_mode = #tpu.pipeline_mode<synchronous>, transform_indices = @transform_3, window_bounds = array<i64: 1, 128>}, {pipeline_mode = #tpu.pipeline_mode<synchronous>, transform_indices = @transform_4, window_bounds = array<i64: 128, 128>}, {pipeline_mode = #tpu.pipeline_mode<synchronous>, transform_indices = @transform_5, window_bounds = array<i64: 1, 128>}, {transform_indices = @transform_6, window_bounds = array<i64: 8, 128>}]} {
    %c0 = arith.constant 0 : index
    %c0_0 = arith.constant 0 : index
    %c0_1 = arith.constant 0 : index
    %0 = vector.load %arg4[%c0, %c0_0, %c0_1] : memref<1x1x32xf32, #tpu.memory_space<vmem>>, vector<1x1x32xf32>
    %1 = vector.shape_cast %0 : vector<1x1x32xf32> to vector<1x32xf32>
    %c0_i32 = arith.constant 0 : i32
    %2 = arith.cmpi eq, %arg2, %c0_i32 : i32
    %3 = arith.extui %2 : i1 to i32
    %c0_i32_2 = arith.constant 0 : i32
    %4 = arith.cmpi ne, %3, %c0_i32_2 : i32
    scf.if %4 {
      %13 = arith.index_cast %arg1 : i32 to index
      %c0_7 = arith.constant 0 : index
      %14 = vector.load %arg11[%13, %c0_7] : memref<8x32xf32, #tpu.memory_space<vmem>>, vector<1x32xf32>
      tpu.vector_store %arg11[%13, %c0_7], %1 {strides = array<i32>} : memref<8x32xf32, #tpu.memory_space<vmem>>, vector<1x32xf32>,
    } else {
    }
    %c0_i32_3 = arith.constant 0 : i32
    %5 = arith.cmpi ne, %arg2, %c0_i32_3 : i32
    %6 = arith.extui %5 : i1 to i32
    %c0_i32_4 = arith.constant 0 : i32
    %7 = arith.cmpi ne, %6, %c0_i32_4 : i32
    scf.if %7 {
      %13 = arith.index_cast %arg1 : i32 to index
      %c0_7 = arith.constant 0 : index
      %14 = vector.load %arg11[%13, %c0_7] : memref<8x32xf32, #tpu.memory_space<vmem>>, vector<1x32xf32>
      %15 = arith.addf %14, %1 : vector<1x32xf32>
      %16 = arith.index_cast %arg1 : i32 to index
      %c0_8 = arith.constant 0 : index
      %17 = vector.load %arg11[%16, %c0_8] : memref<8x32xf32, #tpu.memory_space<vmem>>, vector<1x32xf32>
      tpu.vector_store %arg11[%16, %c0_8], %15 {strides = array<i32>} : memref<8x32xf32, #tpu.memory_space<vmem>>, vector<1x32xf32>,
    } else {
    }
    %c7_i32 = arith.constant 7 : i32
    %8 = arith.cmpi eq, %arg1, %c7_i32 : i32
    %c7_i32_5 = arith.constant 7 : i32
    %9 = arith.cmpi eq, %arg2, %c7_i32_5 : i32
    %10 = arith.andi %8, %9 : i1
    %11 = arith.extui %10 : i1 to i32
    %c0_i32_6 = arith.constant 0 : i32
    %12 = arith.cmpi ne, %11, %c0_i32_6 : i32
    scf.if %12 {
      %c0_7 = arith.constant 0 : index
      %c0_8 = arith.constant 0 : index
      %13 = vector.load %arg5[%c0_7, %c0_8] : memref<8x1xf32, #tpu.memory_space<vmem>>, vector<8x1xf32>
      %14 = tpu.reciprocal %13 : vector<8x1xf32> -> vector<8x1xf32>
      %c0_9 = arith.constant 0 : index
      %c0_10 = arith.constant 0 : index
      %15 = vector.load %arg11[%c0_9, %c0_10] : memref<8x32xf32, #tpu.memory_space<vmem>>, vector<8x32xf32>
      %16 = vector.broadcast %14 : vector<8x1xf32> to vector<8x32xf32>
      %17 = arith.mulf %15, %16 : vector<8x32xf32>
      %c0_11 = arith.constant 0 : index
      %c0_12 = arith.constant 0 : index
      %18 = vector.load %arg6[%c0_11, %c0_12] : memref<32x128xf32, #tpu.memory_space<vmem>>, vector<32x128xf32>
      %cst = arith.constant dense<0.000000e+00> : vector<8x128xf32>
      %19 = tpu.matmul %17, %18, %cst {dimension_numbers = #tpu.dot_dimension_numbers<[1], [0], [0], [1], [0, 0, 1, 1], [], []>} : vector<8x32xf32>, vector<32x128xf32>, vector<8x128xf32> -> vector<8x128xf32>
      %c0_13 = arith.constant 0 : index
      %c0_14 = arith.constant 0 : index
      %20 = vector.load %arg7[%c0_13, %c0_14] : memref<1x128xf32, #tpu.memory_space<vmem>>, vector<1x128xf32>
      %21 = vector.broadcast %20 : vector<1x128xf32> to vector<8x128xf32>
      %22 = arith.addf %19, %21 : vector<8x128xf32>
      %cst_15 = arith.constant 0.000000e+00 : f32
      %23 = vector.broadcast %cst_15 : f32 to vector<8x128xf32>
      %24 = arith.maximumf %22, %23 : vector<8x128xf32>
      %c0_16 = arith.constant 0 : index
      %c0_17 = arith.constant 0 : index
      %25 = vector.load %arg8[%c0_16, %c0_17] : memref<128x128xf32, #tpu.memory_space<vmem>>, vector<128x128xf32>
      %cst_18 = arith.constant dense<0.000000e+00> : vector<8x128xf32>
      %26 = tpu.matmul %24, %25, %cst_18 {dimension_numbers = #tpu.dot_dimension_numbers<[1], [0], [0], [1], [0, 0, 1, 1], [], []>} : vector<8x128xf32>, vector<128x128xf32>, vector<8x128xf32> -> vector<8x128xf32>
      %c0_19 = arith.constant 0 : index
      %c0_20 = arith.constant 0 : index
      %27 = vector.load %arg9[%c0_19, %c0_20] : memref<1x128xf32, #tpu.memory_space<vmem>>, vector<1x128xf32>
      %28 = vector.broadcast %27 : vector<1x128xf32> to vector<8x128xf32>
      %29 = arith.addf %26, %28 : vector<8x128xf32>
      %c0_21 = arith.constant 0 : index
      %c0_22 = arith.constant 0 : index
      %30 = vector.load %arg10[%c0_21, %c0_22] : memref<8x128xf32, #tpu.memory_space<vmem>>, vector<8x128xf32>
      tpu.vector_store %arg10[%c0_21, %c0_22], %29 {strides = array<i32>} : memref<8x128xf32, #tpu.memory_space<vmem>>, vector<8x128xf32>,
    } else {
    }
    return
  }
  func.func @transform_0(%arg0: i32, %arg1: i32, %arg2: i32, %arg3: memref<64xi32, #tpu.memory_space<smem>>) -> (i32, i32, i32) {
    %c8_i32 = arith.constant 8 : i32
    %0 = arith.muli %arg0, %c8_i32 : i32
    %1 = arith.addi %0, %arg1 : i32
    %c8_i32_0 = arith.constant 8 : i32
    %2 = arith.muli %1, %c8_i32_0 : i32
    %3 = arith.addi %2, %arg2 : i32
    %4 = arith.index_cast %3 : i32 to index
    %5 = memref.load %arg3[%4] : memref<64xi32, #tpu.memory_space<smem>>
    %c0_i32 = arith.constant 0 : i32
    %c0_i32_1 = arith.constant 0 : i32
    %c0_i32_2 = arith.constant 0 : i32
    return %5, %c0_i32, %c0_i32_1 : i32, i32, i32
  }
  func.func @transform_1(%arg0: i32, %arg1: i32, %arg2: i32, %arg3: memref<64xi32, #tpu.memory_space<smem>>) -> (i32, i32) {
    %c0_i32 = arith.constant 0 : i32
    %c0_i32_0 = arith.constant 0 : i32
    return %arg0, %c0_i32 : i32, i32
  }
  func.func @transform_2(%arg0: i32, %arg1: i32, %arg2: i32, %arg3: memref<64xi32, #tpu.memory_space<smem>>) -> (i32, i32) {
    %c0_i32 = arith.constant 0 : i32
    %c0_i32_0 = arith.constant 0 : i32
    %c0_i32_1 = arith.constant 0 : i32
    return %c0_i32, %c0_i32_0 : i32, i32
  }
  func.func @transform_3(%arg0: i32, %arg1: i32, %arg2: i32, %arg3: memref<64xi32, #tpu.memory_space<smem>>) -> (i32, i32) {
    %c0_i32 = arith.constant 0 : i32
    %c0_i32_0 = arith.constant 0 : i32
    %c0_i32_1 = arith.constant 0 : i32
    return %c0_i32, %c0_i32_0 : i32, i32
  }
  func.func @transform_4(%arg0: i32, %arg1: i32, %arg2: i32, %arg3: memref<64xi32, #tpu.memory_space<smem>>) -> (i32, i32) {
    %c0_i32 = arith.constant 0 : i32
    %c0_i32_0 = arith.constant 0 : i32
    %c0_i32_1 = arith.constant 0 : i32
    return %c0_i32, %c0_i32_0 : i32, i32
  }
  func.func @transform_5(%arg0: i32, %arg1: i32, %arg2: i32, %arg3: memref<64xi32, #tpu.memory_space<smem>>) -> (i32, i32) {
    %c0_i32 = arith.constant 0 : i32
    %c0_i32_0 = arith.constant 0 : i32
    %c0_i32_1 = arith.constant 0 : i32
    return %c0_i32, %c0_i32_0 : i32, i32
  }
  func.func @transform_6(%arg0: i32, %arg1: i32, %arg2: i32, %arg3: memref<64xi32, #tpu.memory_space<smem>>) -> (i32, i32) {
    %c0_i32 = arith.constant 0 : i32
    %c0_i32_0 = arith.constant 0 : i32
    return %arg0, %c0_i32 : i32, i32
  }
}

</mosaic_0001>

<llo_original>
// kernel: tpu_custom_call.1
$region0: #{tpu_custom_call.1}
  #allocation0 [shape = 'u32[]', space=smem, size = 0x4, offset = 0x4, fixed_abs, tag = 'smem constant byte address 0x4 - core index']
  #allocation1 [shape = 'u32[144,128]{1,0:T(1,128)}', space=vmem, size = 0x12000, scoped, tag = 'internal scratch']
  #allocation2 [shape = 'f32[8,32]{1,0:T(8,128)}', space=vmem, size = 0x1000, scoped, tag = 'scratch operand']
  #allocation3 [shape = 's32[1]{0}', space=sflag, size = 0x4, scoped, tag = 'scoped memory for tpu_custom_call.1']
  #allocation4 [shape = 'u8[512]{0}', space=smem, size = 0x200, scoped, tag = 'prefetched SMEM operand 0']
  %s0 = inlined_call_operand.vmem [shape: s32[64], index: 0, kind: input, shape index: {}]
  %s1 = inlined_call_operand.vmem [shape: f32[50,1,32], index: 1, kind: input, shape index: {}]
  %s2 = inlined_call_operand.vmem [shape: f32[8,1], index: 2, kind: input, shape index: {}]
  %s3 = inlined_call_operand.vmem [shape: f32[32,128], index: 3, kind: input, shape index: {}]
  %s4 = inlined_call_operand.vmem [shape: f32[1,128], index: 4, kind: input, shape index: {}]
  %s5 = inlined_call_operand.hbm [shape: f32[128,128], index: 5, kind: input, shape index: {}]
  %s6 = inlined_call_operand.vmem [shape: f32[1,128], index: 6, kind: input, shape index: {}]
  %s7 = inlined_call_operand.hbm [shape: f32[8,128], index: 7, kind: output, shape index: {}]
  %s8 = sld [smem:[#allocation0]]
  $region73: #{tpu_custom_call.1} parent=0
    _
  %s10 = ssub.s32 1, %s8
  %s11 = scalar_select 0, %s10, %s8
  %s12 = sshll.u32 %s0, 4
  %s13 = int_to_ptr.vmem [resolvable:$true] %s12
  %15 = dma.vmem_to_smem %s13, 16, [#allocation4], [#allocation3]
  %16 = dma.done [#allocation3], 16
  %17 = sfence
  $region1: #{tpu_custom_call.1} parent=0
    #allocation5 [shape = 'u8[65536]{0}', space=vmem, size = 0x10000, scoped, tag = 'input window, operand 5, single buffered']
    #allocation6 [shape = 's32[2]{0}', space=sflag, size = 0x8, scoped, tag = 'scoped memory for tpu_custom_call.1']
    #allocation7 [shape = 's32[2]{0}', space=sflag, size = 0x8, scoped, tag = 'scoped memory for tpu_custom_call.1']
    #allocation8 [shape = 'u8[4096]{0}', space=vmem, size = 0x1000, scoped, tag = 'output window, operand 0, single buffered']
    %18 = vsyncpa [#allocation6], 0
    %19 = vsyncpa [#allocation7], 0
    loop: start=0, step=1, limit=66
    $region2: #{tpu_custom_call.1} parent=1 // loop_pre_header
      _
    $region3: #{tpu_custom_call.1} parent=1 // loop_header
      %s21 = sphi 0, %s25
      %p22 = scmp.ge.s32.totalorder %s21, 66
      %s28 = sphi 0, %s47
      %s29 = sphi 0, %s43
      %s30 = sphi 0, %s39
      %s31 = sphi 0, %s28
      %s32 = sphi 0, %s29
      %s33 = sphi 0, %s30
      %s34 = sphi 0, %s31
      %s35 = sphi 0, %s32
      %s36 = sphi 0, %s33
      %s60 = sphi 0, %s62
      %s63 = sphi 0, %s60
      %s64 = sphi 0, %s63
      %s80 = sphi 0, %s64
      %s86 = sphi 0, %s88
      %s89 = sphi 0, %s86
      %s90 = sphi 0, %s89
      %s106 = sphi 0, %s90
      %s110 = sphi 0, %s110
      %s112 = sphi 0, %s110
      %s113 = sphi 0, %s112
      %s127 = sphi 0, %s113
      %s131 = sphi 0, %s131
      %s133 = sphi 0, %s131
      %s134 = sphi 0, %s133
      %s148 = sphi 0, %s134
      %s152 = sphi 0, %s152
      %s154 = sphi 0, %s152
      %s155 = sphi 0, %s154
      %s169 = sphi 0, %s155
      %s173 = sphi 0, %s173
      %s175 = sphi 0, %s173
      %s176 = sphi 0, %s175
      %s190 = sphi 0, %s176
      %s196 = sphi 0, %s198
      %s199 = sphi 0, %s196
      %s200 = sphi 0, %s199
      %s216 = sphi 0, %s200
    $region4: #{tpu_custom_call.1} parent=1 // loop_header_branch
      %24 = sbr.rel (%p22) target = $region8
    $region5: #{tpu_custom_call.1} parent=1 // loop_body
      %s26 = ssub.s32 %s21, 1
      %s27 = ssub.s32 %s21, 2
      %s37 = sadd.s32 1, %s30
      %p38 = scmp.ge.s32.totalorder %s37, 8
      %s39 = scalar_select %p38, 0, %s37
      %s40 = sadd.s32 1, %s29
      %s41 = scalar_select %p38, %s40, %s29
      %p42 = scmp.ge.s32.totalorder %s41, 8
      %s43 = scalar_select %p42, 0, %s41
      %s44 = sadd.s32 1, %s28
      %s45 = scalar_select %p42, %s44, %s28
      %p46 = scmp.ge.s32.totalorder %s45, 1
      %s47 = scalar_select %p46, 0, %s45
      %s48 = smul.u32 %s28, 8
      %s49 = sadd.s32 %s48, %s29
      %s50 = smul.u32 %s49, 8
      %s51 = sadd.s32 %s50, %s30
      %s52 = sld [smem:[#allocation4 + %s51]]
      %s53 = smul.u32 %s47, 8
      %s54 = sadd.s32 %s53, %s43
      %s55 = smul.u32 %s54, 8
      %s56 = sadd.s32 %s55, %s39
      %s57 = sld [smem:[#allocation4 + %s56]]
      %s58 = ssub.s32 %s52, %s57
      %p59 = scmp.eq.s32.totalorder %s58, 0
      %s61 = sadd.s32 %s60, 1
      %s62 = scalar_select %p59, %s60, %s61
      %p65 = pneg %p59
      %p66 = scmp.eq.s32.totalorder %s21, 63
      %p67 = por %p65, %p66
      %p68 = scmp.ne.s32.totalorder %s60, %s63
      %p69 = scmp.eq.s32.totalorder %s21, 0
      %p70 = por %p68, %p69
      %p71 = scmp.ne.s32.totalorder %s60, %s63
      %p72 = scmp.eq.s32.totalorder %s26, 63
      %p73 = por %p71, %p72
      %p74 = scmp.ne.s32.totalorder %s63, %s64
      %p75 = scmp.eq.s32.totalorder %s26, 0
      %p76 = por %p74, %p75
      %p77 = scmp.ne.s32.totalorder %s63, %s64
      %p78 = scmp.eq.s32.totalorder %s27, 63
      %p79 = por %p77, %p78
      %p81 = scmp.ne.s32.totalorder %s64, %s80
      %p82 = scmp.eq.s32.totalorder %s27, 0
      %p83 = por %p81, %p82
      %s84 = ssub.s32 %s28, %s47
      %p85 = scmp.eq.s32.totalorder %s84, 0
      %s87 = sadd.s32 %s86, 1
      %s88 = scalar_select %p85, %s86, %s87
      %p91 = pneg %p85
      %p92 = scmp.eq.s32.totalorder %s21, 63
      %p93 = por %p91, %p92
      %p94 = scmp.ne.s32.totalorder %s86, %s89
      %p95 = scmp.eq.s32.totalorder %s21, 0
      %p96 = por %p94, %p95
      %p97 = scmp.ne.s32.totalorder %s86, %s89
      %p98 = scmp.eq.s32.totalorder %s26, 63
      %p99 = por %p97, %p98
      %p100 = scmp.ne.s32.totalorder %s89, %s90
      %p101 = scmp.eq.s32.totalorder %s26, 0
      %p102 = por %p100, %p101
      %p103 = scmp.ne.s32.totalorder %s89, %s90
      %p104 = scmp.eq.s32.totalorder %s27, 63
      %p105 = por %p103, %p104
      %p107 = scmp.ne.s32.totalorder %s90, %s106
      %p108 = scmp.eq.s32.totalorder %s27, 0
      %p109 = por %p107, %p108
      %s111 = sadd.s32 %s110, 1
      %p114 = scmp.eq.s32.totalorder %s21, 63
      %p115 = scmp.ne.s32.totalorder %s110, %s112
      %p116 = scmp.eq.s32.totalorder %s21, 0
      %p117 = por %p115, %p116
      %p118 = scmp.ne.s32.totalorder %s110, %s112
      %p119 = scmp.eq.s32.totalorder %s26, 63
      %p120 = por %p118, %p119
      %p121 = scmp.ne.s32.totalorder %s112, %s113
      %p122 = scmp.eq.s32.totalorder %s26, 0
      %p123 = por %p121, %p122
      %p124 = scmp.ne.s32.totalorder %s112, %s113
      %p125 = scmp.eq.s32.totalorder %s27, 63
      %p126 = por %p124, %p125
      %p128 = scmp.ne.s32.totalorder %s113, %s127
      %p129 = scmp.eq.s32.totalorder %s27, 0
      %p130 = por %p128, %p129
      %s132 = sadd.s32 %s131, 1
      %p135 = scmp.eq.s32.totalorder %s21, 63
      %p136 = scmp.ne.s32.totalorder %s131, %s133
      %p137 = scmp.eq.s32.totalorder %s21, 0
      %p138 = por %p136, %p137
      %p139 = scmp.ne.s32.totalorder %s131, %s133
      %p140 = scmp.eq.s32.totalorder %s26, 63
      %p141 = por %p139, %p140
      %p142 = scmp.ne.s32.totalorder %s133, %s134
      %p143 = scmp.eq.s32.totalorder %s26, 0
      %p144 = por %p142, %p143
      %p145 = scmp.ne.s32.totalorder %s133, %s134
      %p146 = scmp.eq.s32.totalorder %s27, 63
      %p147 = por %p145, %p146
      %p149 = scmp.ne.s32.totalorder %s134, %s148
      %p150 = scmp.eq.s32.totalorder %s27, 0
      %p151 = por %p149, %p150
      %s153 = sadd.s32 %s152, 1
      %p156 = scmp.eq.s32.totalorder %s21, 63
      %p157 = scmp.ne.s32.totalorder %s152, %s154
      %p158 = scmp.eq.s32.totalorder %s21, 0
      %p159 = por %p157, %p158
      %p160 = scmp.ne.s32.totalorder %s152, %s154
      %p161 = scmp.eq.s32.totalorder %s26, 63
      %p162 = por %p160, %p161
      %p163 = scmp.ne.s32.totalorder %s154, %s155
      %p164 = scmp.eq.s32.totalorder %s26, 0
      %p165 = por %p163, %p164
      %p166 = scmp.ne.s32.totalorder %s154, %s155
      %p167 = scmp.eq.s32.totalorder %s27, 63
      %p168 = por %p166, %p167
      %p170 = scmp.ne.s32.totalorder %s155, %s169
      %p171 = scmp.eq.s32.totalorder %s27, 0
      %p172 = por %p170, %p171
      %s174 = sadd.s32 %s173, 1
      %p177 = scmp.eq.s32.totalorder %s21, 63
      %p178 = scmp.ne.s32.totalorder %s173, %s175
      %p179 = scmp.eq.s32.totalorder %s21, 0
      %p180 = por %p178, %p179
      %p181 = scmp.ne.s32.totalorder %s173, %s175
      %p182 = scmp.eq.s32.totalorder %s26, 63
      %p183 = por %p181, %p182
      %p184 = scmp.ne.s32.totalorder %s175, %s176
      %p185 = scmp.eq.s32.totalorder %s26, 0
      %p186 = por %p184, %p185
      %p187 = scmp.ne.s32.totalorder %s175, %s176
      %p188 = scmp.eq.s32.totalorder %s27, 63
      %p189 = por %p187, %p188
      %p191 = scmp.ne.s32.totalorder %s176, %s190
      %p192 = scmp.eq.s32.totalorder %s27, 0
      %p193 = por %p191, %p192
      %s194 = ssub.s32 %s28, %s47
      %p195 = scmp.eq.s32.totalorder %s194, 0
      %s197 = sadd.s32 %s196, 1
      %s198 = scalar_select %p195, %s196, %s197
      %p201 = pneg %p195
      %p202 = scmp.eq.s32.totalorder %s21, 63
      %p203 = por %p201, %p202
      %p204 = scmp.ne.s32.totalorder %s196, %s199
      %p205 = scmp.eq.s32.totalorder %s21, 0
      %p206 = por %p204, %p205
      %p207 = scmp.ne.s32.totalorder %s196, %s199
      %p208 = scmp.eq.s32.totalorder %s26, 63
      %p209 = por %p207, %p208
      %p210 = scmp.ne.s32.totalorder %s199, %s200
      %p211 = scmp.eq.s32.totalorder %s26, 0
      %p212 = por %p210, %p211
      %p213 = scmp.ne.s32.totalorder %s199, %s200
      %p214 = scmp.eq.s32.totalorder %s27, 63
      %p215 = por %p213, %p214
      %p217 = scmp.ne.s32.totalorder %s200, %s216
      %p218 = scmp.eq.s32.totalorder %s27, 0
      %p219 = por %p217, %p218
      %p220 = scmp.le.s32.totalorder 1, %s21
      %p221 = scmp.lt.s32.totalorder %s21, 65
      %p222 = pnand %p220, %p221
      %p223 = pneg %p222
      // Predicated region
      $region9: #{tpu_custom_call.1} parent=5 // pred_check
        _
      $region10: #{tpu_custom_call.1} parent=5 // pred_check_branch
        %225 = sbr.rel (%p222) target = $region12
      $region11: #{tpu_custom_call.1} parent=5 // pred_region
        %s226 = ssub.s32 %s21, 1
        // Predicated region
        $region13: #{tpu_custom_call.1} parent=11 // pred_check
          %p227 = pneg %p102
        $region14: #{tpu_custom_call.1} parent=11 // pred_check_branch
          %229 = sbr.rel (%p227) target = $region16
        $region15: #{tpu_custom_call.1} parent=11 // pred_region
          %p230 = scmp.lt.s32.totalorder %s31, 0
          %s231 = scalar_select %p230, %s31, 0
          %s232 = smul.addr %s231, 8
          %s233 = scalar_lea.vmem %s2, %s232
        $region16: #{tpu_custom_call.1} parent=11 // pred_fallthru
          _
        // Predicated region
        $region17: #{tpu_custom_call.1} parent=11 // pred_check
          %p234 = pneg %p123
        $region18: #{tpu_custom_call.1} parent=11 // pred_check_branch
          %236 = sbr.rel (%p234) target = $region20
        $region19: #{tpu_custom_call.1} parent=11 // pred_region
          _
        $region20: #{tpu_custom_call.1} parent=11 // pred_fallthru
          _
        // Predicated region
        $region21: #{tpu_custom_call.1} parent=11 // pred_check
          %p237 = pneg %p144
        $region22: #{tpu_custom_call.1} parent=11 // pred_check_branch
          %239 = sbr.rel (%p237) target = $region24
        $region23: #{tpu_custom_call.1} parent=11 // pred_region
          _
        $region24: #{tpu_custom_call.1} parent=11 // pred_fallthru
          _
        // Predicated region
        $region25: #{tpu_custom_call.1} parent=11 // pred_check
          %p240 = pneg %p165
        $region26: #{tpu_custom_call.1} parent=11 // pred_check_branch
          %242 = sbr.rel (%p240) target = $region28
        $region27: #{tpu_custom_call.1} parent=11 // pred_region
          %s244 = ssub.s32 2048, 2048
          %245 = vsyncadd [#allocation6], %s244
          %s246 = sshll.u32 [#allocation5], 4
          %s247 = int_to_ptr.vmem [resolvable:$true] %s246
          %252 = dma.hbm_to_vmem [thread:$0]  %s5, 2048, %s247, [#allocation6], 128, 128, 8
        $region28: #{tpu_custom_call.1} parent=11 // pred_fallthru
          _
        // Predicated region
        $region29: #{tpu_custom_call.1} parent=11 // pred_check
          %p253 = pneg %p186
        $region30: #{tpu_custom_call.1} parent=11 // pred_check_branch
          %255 = sbr.rel (%p253) target = $region32
        $region31: #{tpu_custom_call.1} parent=11 // pred_region
          _
        $region32: #{tpu_custom_call.1} parent=11 // pred_fallthru
          _
      $region12: #{tpu_custom_call.1} parent=5 // pred_fallthru
        _
      %p256 = scmp.lt.s32.totalorder %s21, 64
      // Predicated region
      $region33: #{tpu_custom_call.1} parent=5 // pred_check
        %p257 = pneg %p256
      $region34: #{tpu_custom_call.1} parent=5 // pred_check_branch
        %259 = sbr.rel (%p257) target = $region36
      $region35: #{tpu_custom_call.1} parent=5 // pred_region
        // Predicated region
        $region37: #{tpu_custom_call.1} parent=35 // pred_check
          %p260 = pneg %p70
        $region38: #{tpu_custom_call.1} parent=35 // pred_check_branch
          %262 = sbr.rel (%p260) target = $region40
        $region39: #{tpu_custom_call.1} parent=35 // pred_region
          %s263 = smul.u32 %s28, 8
          %s264 = sadd.s32 %s263, %s29
          %s265 = smul.u32 %s264, 8
          %s266 = sadd.s32 %s265, %s30
          %s267 = sld [smem:[#allocation4 + %s266]]
          %p268 = scmp.lt.s32.totalorder %s267, 49
          %s269 = scalar_select %p268, %s267, 49
          %s270 = scalar_lea.vmem %s1, %s269
          %s271 = smul.u32 %s28, 8
          %s272 = sadd.s32 %s271, %s29
          %s273 = smul.u32 %s272, 8
          %s274 = sadd.s32 %s273, %s30
          %s275 = sld [smem:[#allocation4 + %s274]]
        $region40: #{tpu_custom_call.1} parent=35 // pred_fallthru
          _
      $region36: #{tpu_custom_call.1} parent=5 // pred_fallthru
        _
      %p276 = scmp.le.s32.totalorder 1, %s21
      %p277 = scmp.lt.s32.totalorder %s21, 65
      %p278 = pnand %p276, %p277
      %p279 = pneg %p278
      // Predicated region
      $region41: #{tpu_custom_call.1} parent=5 // pred_check
        _
      $region42: #{tpu_custom_call.1} parent=5 // pred_check_branch
        %281 = sbr.rel (%p278) target = $region44
      $region43: #{tpu_custom_call.1} parent=5 // pred_region
        %s282 = ssub.s32 %s21, 1
        // Predicated region
        $region45: #{tpu_custom_call.1} parent=43 // pred_check
          %p283 = pneg %p165
        $region46: #{tpu_custom_call.1} parent=43 // pred_check_branch
          %285 = sbr.rel (%p283) target = $region48
        $region47: #{tpu_custom_call.1} parent=43 // pred_region
          %286 = dma.done [#allocation6], 2048
        $region48: #{tpu_custom_call.1} parent=43 // pred_fallthru
          _
        %s287 = smul.u32 %s31, 8
        %s288 = sadd.s32 %s287, %s32
        %s289 = smul.u32 %s288, 8
        %s290 = sadd.s32 %s289, %s33
        %s291 = sld [smem:[#allocation4 + %s290]]
        %p292 = scmp.lt.s32.totalorder %s291, 49
        %s293 = scalar_select %p292, %s291, 49
        %s294 = scalar_lea.vmem %s1, %s293
        %p295 = pneg %p76
        %p296 = pneg %p73
        %p297 = scmp.lt.s32.totalorder %s31, 0
        %s298 = scalar_select %p297, %s31, 0
        %s299 = smul.addr %s298, 8
        %s300 = scalar_lea.vmem %s2, %s299
        %p301 = pneg %p102
        %p302 = pneg %p99
        %p303 = pneg %p123
        %p304 = pneg %p120
        %p305 = pneg %p144
        %p306 = pneg %p141
        %p307 = pneg %p165
        %p308 = pneg %p162
        %p309 = pneg %p186
        %p310 = pneg %p183
        %p311 = pneg %p212
        %p312 = pneg %p209
        %s313 = smul.u32 %s31, 8
        %s314 = sadd.s32 %s313, %s32
        %s315 = smul.u32 %s314, 8
        %s316 = sadd.s32 %s315, %s33
        %s317 = sld [smem:[#allocation4 + %s316]]
        %p318 = scmp.lt.s32.totalorder %s317, 49
        %s319 = scalar_select %p318, %s317, 49
        %s320 = scalar_lea.vmem %s1, %s319
        %s321 = smul.u32 %s31, 8
        %s322 = sadd.s32 %s321, %s32
        %s323 = smul.u32 %s322, 8
        %s324 = sadd.s32 %s323, %s33
        %s325 = sld [smem:[#allocation4 + %s324]]
        %p326 = scmp.lt.s32.totalorder %s31, 0
        %s327 = scalar_select %p326, %s31, 0
        %s328 = smul.addr %s327, 8
        %s329 = scalar_lea.vmem %s2, %s328
        %v330 = vld [vmem:[%s320] sm:$0x1]
        %p331 = scmp.eq.s32.totalorder %s33, 0
        // Predicated region
        $region49: #{tpu_custom_call.1} parent=43 // pred_check
          %p332 = pneg %p331
        $region50: #{tpu_custom_call.1} parent=43 // pred_check_branch
          %334 = sbr.rel (%p332) target = $region52
        $region51: #{tpu_custom_call.1} parent=43 // pred_region
          %s335 = scalar_lea.vmem [#allocation2], %s32
          %vm336 = vcmask 253952
          %337 = vst.msk [vmem:[%s335] sm:$0x1] %vm336, %v330
        $region52: #{tpu_custom_call.1} parent=43 // pred_fallthru
          _
        %p338 = scmp.ne.s32.totalorder %s33, 0
        // Predicated region
        $region53: #{tpu_custom_call.1} parent=43 // pred_check
          %p339 = pneg %p338
        $region54: #{tpu_custom_call.1} parent=43 // pred_check_branch
          %341 = sbr.rel (%p339) target = $region56
        $region55: #{tpu_custom_call.1} parent=43 // pred_region
          %s342 = scalar_lea.vmem [#allocation2], %s32
          %v343 = vld [vmem:[%s342] sm:$0x1]
          %v344 = vadd.f32 %v343, %v330
          %vm345 = vcmask 253952
          %346 = vst.msk [vmem:[%s342] sm:$0x1] %vm345, %v344
        $region56: #{tpu_custom_call.1} parent=43 // pred_fallthru
          _
        %p347 = scmp.eq.s32.totalorder %s32, 7
        %p348 = scmp.eq.s32.totalorder %s33, 7
        %p349 = pnand %p347, %p348
        %p350 = pneg %p349
        // Predicated region
        $region57: #{tpu_custom_call.1} parent=43 // pred_check
          _
        $region58: #{tpu_custom_call.1} parent=43 // pred_check_branch
          %352 = sbr.rel (%p349) target = $region60
        $region59: #{tpu_custom_call.1} parent=43 // pred_region
          %v353 = vld [vmem:[%s329] sm:$0xff]
          %v354 = vrcp.pop %v353
          %v355 = vld [vmem:[#allocation2] sm:$0xff]
          %357 = vset.pattern.permute.xlu0 0
          %358 = vperm.xlu0 %357, %v354
          %v359 = vpop.permute.xlu0 %358
          %v361 = vmul.f32 %v355, %v359
          %v362 = vld [vmem:[%s3] sm:$0xff]
          %v363 = vld [vmem:[%s3 + $0x8] sm:$0xff]
          %v364 = vld [vmem:[%s3 + $0x10] sm:$0xff]
          %v365 = vld [vmem:[%s3 + $0x18] sm:$0xff]
          %v366 = vld [vmem:[%s4] sm:$0x1]
          %v368 = vlaneseq
          %v369 = vshrl.u32 %v368, 7
          %v370 = vsub.s32 0, %v369
          %v371 = vrot.slane %v366, %v370
          %vm373 = vcmask 261120
          %v375 = vsel %vm373, %v361, 0
          %377 = vmatprep.subr.mxu0 0.0
          %378 = vmatpush1.msra.mxu0 %v362
          %379 = vmatprep.subr.mxu0 0.0
          %380 = vmatpush1.msra.mxu0 %v363
          %381 = vmatprep.subr.mxu0 0.0
          %382 = vmatpush1.msra.mxu0 %v364
          %383 = vmatprep.subr.mxu0 0.0
          %384 = vmatpush1.msra.mxu0 %v365
          %385 = vmatprep.subr.mxu0 0.0
          %386 = vmatpush1.msra.mxu0 0.0
          %387 = vmatprep.subr.mxu0 0.0
          %388 = vmatpush1.msra.mxu0 0.0
          %389 = vmatprep.subr.mxu0 0.0
          %390 = vmatpush1.msra.mxu0 0.0
          %391 = vmatprep.subr.mxu0 0.0
          %392 = vmatpush1.msra.mxu0 0.0
          %393 = vmatprep.subr.mxu0 0.0
          %394 = vmatpush1.msra.mxu0 0.0
          %395 = vmatprep.subr.mxu0 0.0
          %396 = vmatpush1.msra.mxu0 0.0
          %397 = vmatprep.subr.mxu0 0.0
          %398 = vmatpush1.msra.mxu0 0.0
          %399 = vmatprep.subr.mxu0 0.0
          %400 = vmatpush1.msra.mxu0 0.0
          %401 = vmatprep.subr.mxu0 0.0
          %402 = vmatpush1.msra.mxu0 0.0
          %403 = vmatprep.subr.mxu0 0.0
          %404 = vmatpush1.msra.mxu0 0.0
          %405 = vmatprep.subr.mxu0 0.0
          %406 = vmatpush1.msra.mxu0 0.0
          %407 = vmatprep.subr.mxu0 0.0
          %408 = vmatpush1.msra.mxu0 0.0
          %409 = vmatprep.subr.mxu0 0.0
          %410 = vmatpush1.msra.mxu0 0.0
          %411 = vmatprep.subr.mxu0 0.0
          %412 = vmatpush1.msra.mxu0 0.0
          %413 = vmatprep.subr.mxu0 0.0
          %414 = vmatpush1.msra.mxu0 0.0
          %415 = vmatprep.subr.mxu0 0.0
          %416 = vmatpush1.msra.mxu0 0.0
          %417 = vmatprep.subr.mxu0 0.0
          %418 = vmatpush1.msra.mxu0 0.0
          %419 = vmatprep.subr.mxu0 0.0
          %420 = vmatpush1.msra.mxu0 0.0
          %421 = vmatprep.subr.mxu0 0.0
          %422 = vmatpush1.msra.mxu0 0.0
          %423 = vmatprep.subr.mxu0 0.0
          %424 = vmatpush1.msra.mxu0 0.0
          %425 = vmatprep.subr.mxu0 0.0
          %426 = vmatpush1.msra.mxu0 0.0
          %427 = vmatprep.subr.mxu0 0.0
          %428 = vmatpush1.msra.mxu0 0.0
          %429 = vmatprep.subr.mxu0 0.0
          %430 = vmatpush1.msra.mxu0 0.0
          %431 = vmatprep.subr.mxu0 0.0
          %432 = vmatpush1.msra.mxu0 0.0
          %433 = vmatprep.subr.mxu0 0.0
          %434 = vmatpush1.msra.mxu0 0.0
          %435 = vmatprep.subr.mxu0 0.0
          %436 = vmatpush1.msra.mxu0 0.0
          %437 = vmatprep.subr.mxu0 0.0
          %438 = vmatpush1.msra.mxu0 0.0
          %439 = vmatprep.subr.mxu0 0.0
          %440 = vmatpush1.msra.mxu0 0.0
          %441 = vmatprep.mubr.f32.mxu0 0.0
          %442 = vmatmul.mubr.f32.gmra.mrb[0].mxu0 %v375
          %v443 = vpop.f32.mrb[0].mxu0
          %v444 = vadd.f32 %v371, %v443
          %v445 = vpop.f32.mrb[0].mxu0
          %446 = vdwg.mxu0
          %v447 = vmax.f32 %v444, 0.0
          %v448 = vld [vmem:[#allocation5] sm:$0xff]
          %v449 = vld [vmem:[#allocation5 + $0x8] sm:$0xff]
          %v450 = vld [vmem:[#allocation5 + $0x10] sm:$0xff]
          %v451 = vld [vmem:[#allocation5 + $0x18] sm:$0xff]
          %v452 = vld [vmem:[#allocation5 + $0x20] sm:$0xff]
          %v453 = vld [vmem:[#allocation5 + $0x28] sm:$0xff]
          %v454 = vld [vmem:[#allocation5 + $0x30] sm:$0xff]
          %v455 = vld [vmem:[#allocation5 + $0x38] sm:$0xff]
          %v456 = vld [vmem:[#allocation5 + $0x40] sm:$0xff]
          %v457 = vld [vmem:[#allocation5 + $0x48] sm:$0xff]
          %v458 = vld [vmem:[#allocation5 + $0x50] sm:$0xff]
          %v459 = vld [vmem:[#allocation5 + $0x58] sm:$0xff]
          %v460 = vld [vmem:[#allocation5 + $0x60] sm:$0xff]
          %v461 = vld [vmem:[#allocation5 + $0x68] sm:$0xff]
          %v462 = vld [vmem:[#allocation5 + $0x70] sm:$0xff]
          %v463 = vld [vmem:[#allocation5 + $0x78] sm:$0xff]
          %v464 = vld [vmem:[%s6] sm:$0x1]
          %v466 = vlaneseq
          %v467 = vshrl.u32 %v466, 7
          %v468 = vsub.s32 0, %v467
          %v469 = vrot.slane %v464, %v468
          %471 = vmatprep.subr.mxu0 0.0
          %472 = vmatpush1.msra.mxu0 %v448
          %473 = vmatprep.subr.mxu0 0.0
          %474 = vmatpush1.msra.mxu0 %v449
          %475 = vmatprep.subr.mxu0 0.0
          %476 = vmatpush1.msra.mxu0 %v450
          %477 = vmatprep.subr.mxu0 0.0
          %478 = vmatpush1.msra.mxu0 %v451
          %479 = vmatprep.subr.mxu0 0.0
          %480 = vmatpush1.msra.mxu0 %v452
          %481 = vmatprep.subr.mxu0 0.0
          %482 = vmatpush1.msra.mxu0 %v453
          %483 = vmatprep.subr.mxu0 0.0
          %484 = vmatpush1.msra.mxu0 %v454
          %485 = vmatprep.subr.mxu0 0.0
          %486 = vmatpush1.msra.mxu0 %v455
          %487 = vmatprep.subr.mxu0 0.0
          %488 = vmatpush1.msra.mxu0 %v456
          %489 = vmatprep.subr.mxu0 0.0
          %490 = vmatpush1.msra.mxu0 %v457
          %491 = vmatprep.subr.mxu0 0.0
          %492 = vmatpush1.msra.mxu0 %v458
          %493 = vmatprep.subr.mxu0 0.0
          %494 = vmatpush1.msra.mxu0 %v459
          %495 = vmatprep.subr.mxu0 0.0
          %496 = vmatpush1.msra.mxu0 %v460
          %497 = vmatprep.subr.mxu0 0.0
          %498 = vmatpush1.msra.mxu0 %v461
          %499 = vmatprep.subr.mxu0 0.0
          %500 = vmatpush1.msra.mxu0 %v462
          %501 = vmatprep.subr.mxu0 0.0
          %502 = vmatpush1.msra.mxu0 %v463
          %503 = vmatprep.subr.mxu0 0.0
          %504 = vmatpush1.msra.mxu0 0.0
          %505 = vmatprep.subr.mxu0 0.0
          %506 = vmatpush1.msra.mxu0 0.0
          %507 = vmatprep.subr.mxu0 0.0
          %508 = vmatpush1.msra.mxu0 0.0
          %509 = vmatprep.subr.mxu0 0.0
          %510 = vmatpush1.msra.mxu0 0.0
          %511 = vmatprep.subr.mxu0 0.0
          %512 = vmatpush1.msra.mxu0 0.0
          %513 = vmatprep.subr.mxu0 0.0
          %514 = vmatpush1.msra.mxu0 0.0
          %515 = vmatprep.subr.mxu0 0.0
          %516 = vmatpush1.msra.mxu0 0.0
          %517 = vmatprep.subr.mxu0 0.0
          %518 = vmatpush1.msra.mxu0 0.0
          %519 = vmatprep.subr.mxu0 0.0
          %520 = vmatpush1.msra.mxu0 0.0
          %521 = vmatprep.subr.mxu0 0.0
          %522 = vmatpush1.msra.mxu0 0.0
          %523 = vmatprep.subr.mxu0 0.0
          %524 = vmatpush1.msra.mxu0 0.0
          %525 = vmatprep.subr.mxu0 0.0
          %526 = vmatpush1.msra.mxu0 0.0
          %527 = vmatprep.subr.mxu0 0.0
          %528 = vmatpush1.msra.mxu0 0.0
          %529 = vmatprep.subr.mxu0 0.0
          %530 = vmatpush1.msra.mxu0 0.0
          %531 = vmatprep.subr.mxu0 0.0
          %532 = vmatpush1.msra.mxu0 0.0
          %533 = vmatprep.subr.mxu0 0.0
          %534 = vmatpush1.msra.mxu0 0.0
          %535 = vmatprep.mubr.f32.mxu0 0.0
          %536 = vmatmul.mubr.f32.gmra.mrb[0].mxu0 %v447
          %v537 = vpop.f32.mrb[0].mxu0
          %v538 = vadd.f32 %v469, %v537
          %v539 = vpop.f32.mrb[0].mxu0
          %540 = vdwg.mxu0
          %541 = vst [vmem:[#allocation8] sm:$0xff] %v538
        $region60: #{tpu_custom_call.1} parent=43 // pred_fallthru
          _
        // Predicated region
        $region61: #{tpu_custom_call.1} parent=43 // pred_check
          %p542 = pneg %p209
        $region62: #{tpu_custom_call.1} parent=43 // pred_check_branch
          %544 = sbr.rel (%p542) target = $region64
        $region63: #{tpu_custom_call.1} parent=43 // pred_region
          %s546 = ssub.s32 128, 128
          %547 = vsyncadd [#allocation7], %s546
          %s548 = smul.addr %s31, 128
          %s549 = scalar_lea.hbm %s7, %s548
          %s551 = sshll.u32 [#allocation8], 4
          %s552 = int_to_ptr.vmem [resolvable:$true] %s551
          %554 = dma.vmem_to_hbm [thread:$0]  %s552, 128, %s549, [#allocation7]
        $region64: #{tpu_custom_call.1} parent=43 // pred_fallthru
          _
        // Predicated region
        $region65: #{tpu_custom_call.1} parent=43 // pred_check
          %p555 = pneg %p209
        $region66: #{tpu_custom_call.1} parent=43 // pred_check_branch
          %557 = sbr.rel (%p555) target = $region68
        $region67: #{tpu_custom_call.1} parent=43 // pred_region
          %558 = dma.done [#allocation7], 128
        $region68: #{tpu_custom_call.1} parent=43 // pred_fallthru
          _
      $region44: #{tpu_custom_call.1} parent=5 // pred_fallthru
        _
      %p559 = scmp.le.s32.totalorder 2, %s21
      // Predicated region
      $region69: #{tpu_custom_call.1} parent=5 // pred_check
        %p560 = pneg %p559
      $region70: #{tpu_custom_call.1} parent=5 // pred_check_branch
        %562 = sbr.rel (%p560) target = $region72
      $region71: #{tpu_custom_call.1} parent=5 // pred_region
        %s563 = ssub.s32 %s21, 2
      $region72: #{tpu_custom_call.1} parent=5 // pred_fallthru
        _
    $region6: #{tpu_custom_call.1} parent=1 // loop_footer
      %s25 = sadd.s32 1, %s21
    $region7: #{tpu_custom_call.1} parent=1 // loop_footer_branch
      %20 = sbr.rel target = $region3
    $region8: #{tpu_custom_call.1} parent=1 // loop_exit
      _
    %564 = vsyncpa [#allocation6], 1
    %s565 = scalar_lea.sflag [#allocation6], 1
    %566 = vsyncpa %s565, 1
    %567 = vsyncpa [#allocation7], 1
    %s568 = scalar_lea.sflag [#allocation7], 1
    %569 = vsyncpa %s568, 1

</llo_original>
